<compile_context>
chip_gen: v5e
topology: v5e:2x2
jax: 0.10.0
libtpu: 0.0.40
codegen_flags: <defaults>
</compile_context>

<pallas_src>
import functools

import jax
import jax.numpy as jnp
from jax.experimental import pallas as pl
from jax.experimental.pallas import tpu as pltpu


def _round_up(x, m):
    return ((x + m - 1) // m) * m


# ---------------------------------------------------------------------------
# Pallas kernel: one (tm, k_pad) bf16 activation tile @ resident (k_pad, e_pad)
# bf16 weight, f32 MXU accumulation, f32 bias add, bf16 store (lane-dense).
# ---------------------------------------------------------------------------
def _embed_kernel(x_ref, w_ref, b_ref, o_ref):
    acc = jnp.dot(x_ref[...], w_ref[...], preferred_element_type=jnp.float32)
    o_ref[...] = (acc + b_ref[...]).astype(o_ref.dtype)


def masked_embedder_forward(x, w_embed, b_embed, patch_size, *,
                            out_dtype=jnp.float32, tm_max=512, use_pallas=None):
    """JAX/Pallas equivalent of MaskedEmbedder.forward.

    x        : [B, C, H, W] float32 (NCHW, same as PyTorch)
    w_embed  : [embed_dim, in_dim]   (PyTorch nn.Linear weight layout,
                                      in_dim in (p1, p2, c) order)
    b_embed  : [embed_dim]
    returns  : [B, n_patches, embed_dim] in `out_dtype` (f32 by default)
    """
    if isinstance(patch_size, int):
        patch_size = (patch_size, patch_size)
    p1, p2 = patch_size
    B, C, H, W = x.shape
    hn, wn = H // p1, W // p2
    n_patches = hn * wn
    in_dim = p1 * p2 * C
    embed_dim = w_embed.shape[0]

    # --- patchify: keep contiguous p2 innermost; feature order (c, p1, p2) ---
    xb = x.astype(jnp.bfloat16)                       # halve bytes moved
    xp = xb.reshape(B, C, hn, p1, wn, p2)
    xp = jnp.transpose(xp, (0, 2, 4, 1, 3, 5))        # [B, hn, wn, C, p1, p2]
    x2d = xp.reshape(B * n_patches, in_dim)           # [M, K] bf16, (c p1 p2)

    # --- one-time weight column permutation (p1 p2 c) -> (c p1 p2) -----------
    w_perm = jnp.transpose(w_embed.reshape(embed_dim, p1, p2, C), (0, 3, 1, 2))
    wT = w_perm.reshape(embed_dim, in_dim).T.astype(jnp.bfloat16)   # [K, E]
    b2d = b_embed.reshape(1, embed_dim).astype(jnp.float32)

    M, K = x2d.shape

    # --- small-problem fast path: pallas_call fixed cost >> math -------------
    if use_pallas is None:
        use_pallas = (M * K * embed_dim) >= 8_000_000
    if not use_pallas:
        out2d = jnp.dot(x2d, wT, preferred_element_type=jnp.float32) + b2d
        return out2d.astype(out_dtype).reshape(B, n_patches, embed_dim)

    # --- pad K and E to 128 lanes (zero-padding; no numeric change) ----------
    k_pad = _round_up(K, 128)
    e_pad = _round_up(embed_dim, 128)
    if k_pad != K:
        x2d = jnp.pad(x2d, ((0, 0), (0, k_pad - K)))
        wT = jnp.pad(wT, ((0, k_pad - K), (0, 0)))
    if e_pad != embed_dim:
        wT = jnp.pad(wT, ((0, 0), (0, e_pad - embed_dim)))
        b2d = jnp.pad(b2d, ((0, 0), (0, e_pad - embed_dim)))

    # --- M tiling: multiple of 16 (bf16 packing), aim for >=4 grid steps -----
    tm = min(tm_max, _round_up(pl.cdiv(M, 4), 16))
    m_pad = _round_up(M, tm)
    if m_pad != M:
        x2d = jnp.pad(x2d, ((0, m_pad - M), (0, 0)))
    grid_m = m_pad // tm

    # --- honest VMEM budget (double-buffered tiles + resident weight/bias) ---
    vmem_need = (2 * tm * k_pad * 2          # activation tile, bf16, 2 bufs
                 + 2 * tm * e_pad * 2        # output tile, bf16, 2 bufs
                 + 2 * k_pad * e_pad * 2     # weight, bf16 (Pallas still 2 bufs)
                 + 2 * 8 * e_pad * 4)        # bias (1, e_pad) f32, 8-sublane pad
    vmem_limit = max(vmem_need + (2 << 20), 4 << 20)   # + headroom for fusions

    out2d = pl.pallas_call(
        _embed_kernel,
        out_shape=jax.ShapeDtypeStruct((m_pad, e_pad), jnp.bfloat16),
        grid_spec=pltpu.PrefetchScalarGridSpec(
            num_scalar_prefetch=0,
            grid=(grid_m,),
            in_specs=[
                pl.BlockSpec((tm, k_pad), lambda i: (i, 0)),      # activations
                pl.BlockSpec((k_pad, e_pad), lambda i: (0, 0)),   # resident W
                pl.BlockSpec((1, e_pad), lambda i: (0, 0)),       # resident b
            ],
            out_specs=pl.BlockSpec((tm, e_pad), lambda i: (i, 0)),
        ),
        compiler_params=pltpu.CompilerParams(
            dimension_semantics=("parallel",),
            vmem_limit_bytes=vmem_limit,
        ),
    )(x2d, wT, b2d)

    # Unavoidable (contract returns [B, n_patches, embed_dim]); slice + upcast
    # happen in one pass over bf16 data.
    out2d = out2d[:M, :embed_dim].astype(out_dtype)
    return out2d.reshape(B, n_patches, embed_dim)


# TODO(synk): get_indices() / RectangleExtractor / difference_of_indices are
# host-side numpy RNG index bookkeeping (not part of forward); no Pallas path.

if __name__ == "__main__":
    # Small shapes consistent with the module:
    #   h = w = 16, in_channels = 4, patch_size = 4 -> n_patches = 16,
    #   in_dim = 4*4*4 = 64, embed_dim = 32, batch = 2.
    B, C, H, W = 2, 4, 16, 16
    P = (4, 4)
    in_dim = P[0] * P[1] * C
    embed_dim = 32

    key = jax.random.PRNGKey(0)
    kx, kw, kb = jax.random.split(key, 3)
    x = jax.random.normal(kx, (B, C, H, W), dtype=jnp.float32)
    bound = 1.0 / (in_dim ** 0.5)
    w_embed = jax.random.uniform(kw, (embed_dim, in_dim),
                                 minval=-bound, maxval=bound, dtype=jnp.float32)
    b_embed = jax.random.uniform(kb, (embed_dim,),
                                 minval=-bound, maxval=bound, dtype=jnp.float32)

    # Forced Pallas path (exercises the kernel even at tiny shapes) and the
    # auto path (which takes the small-problem XLA fast path here).
    fwd_pallas = jax.jit(functools.partial(masked_embedder_forward,
                                           patch_size=P, use_pallas=True))
    fwd_auto = jax.jit(functools.partial(masked_embedder_forward, patch_size=P))

    out = jax.block_until_ready(fwd_pallas(x, w_embed, b_embed))
    out_auto = jax.block_until_ready(fwd_auto(x, w_embed, b_embed))

    # --- references (PyTorch patch order (p1 p2 c)) ---------------------------
    xp = x.reshape(B, C, H // P[0], P[0], W // P[1], P[1])
    xp = jnp.transpose(xp, (0, 2, 4, 3, 5, 1)).reshape(B, -1, in_dim)
    # same-precision reference (bf16 inputs, f32 accumulation)
    ref_bf16 = jnp.dot(xp.astype(jnp.bfloat16),
                       w_embed.T.astype(jnp.bfloat16),
                       preferred_element_type=jnp.float32) + b_embed
    # full-f32 reference (loose tolerance: inputs rounded to bf16, bf16 store)
    ref_f32 = xp @ w_embed.T + b_embed

    n_patches = (H // P[0]) * (W // P[1])
    assert out.shape == (B, n_patches, embed_dim)
    assert out.dtype == jnp.float32
    assert out_auto.shape == out.shape and out_auto.dtype == jnp.float32
    assert jnp.allclose(out, ref_bf16, atol=2e-2, rtol=2e-2)
    assert jnp.allclose(out, ref_f32, atol=5e-2, rtol=5e-2)
    assert jnp.allclose(out_auto, ref_f32, atol=5e-2, rtol=5e-2)
    assert jnp.allclose(out, out_auto, atol=2e-2, rtol=2e-2)

    print("KERNEL_OK")
</pallas_src>

<mosaic_0001>
module attributes {stable_mosaic.version = 11 : i64} {
  func.func @_embed_kernel(%arg0: i32, %arg1: memref<16x128xbf16, #tpu.memory_space<vmem>>, %arg2: memref<128x128xbf16, #tpu.memory_space<vmem>>, %arg3: memref<1x128xf32, #tpu.memory_space<vmem>>, %arg4: memref<16x128xbf16, #tpu.memory_space<vmem>>) attributes {dimension_semantics = [#tpu.dimension_semantics<parallel>], iteration_bounds = array<i64: 2>, scalar_prefetch = 0 : i64, scratch_operands = 0 : i64, tpu.core_type = #tpu.core_type<tc>, window_params = [{transform_indices = @transform_0, window_bounds = array<i64: 16, 128>}, {pipeline_mode = #tpu.pipeline_mode<synchronous>, transform_indices = @transform_1, window_bounds = array<i64: 128, 128>}, {pipeline_mode = #tpu.pipeline_mode<synchronous>, transform_indices = @transform_2, window_bounds = array<i64: 1, 128>}, {transform_indices = @transform_3, window_bounds = array<i64: 16, 128>}]} {
    %c0 = arith.constant 0 : index
    %c0_0 = arith.constant 0 : index
    %0 = vector.load %arg1[%c0, %c0_0] : memref<16x128xbf16, #tpu.memory_space<vmem>>, vector<16x128xbf16>
    %c0_1 = arith.constant 0 : index
    %c0_2 = arith.constant 0 : index
    %1 = vector.load %arg2[%c0_1, %c0_2] : memref<128x128xbf16, #tpu.memory_space<vmem>>, vector<128x128xbf16>
    %cst = arith.constant dense<0.000000e+00> : vector<16x128xf32>
    %2 = tpu.matmul %0, %1, %cst {dimension_numbers = #tpu.dot_dimension_numbers<[1], [0], [0], [1], [0, 0, 1, 1], [], []>} : vector<16x128xbf16>, vector<128x128xbf16>, vector<16x128xf32> -> vector<16x128xf32>
    %c0_3 = arith.constant 0 : index
    %c0_4 = arith.constant 0 : index
    %3 = vector.load %arg3[%c0_3, %c0_4] : memref<1x128xf32, #tpu.memory_space<vmem>>, vector<1x128xf32>
    %4 = vector.broadcast %3 : vector<1x128xf32> to vector<16x128xf32>
    %5 = arith.addf %2, %4 : vector<16x128xf32>
    %6 = arith.truncf %5 : vector<16x128xf32> to vector<16x128xbf16>
    %c0_5 = arith.constant 0 : index
    %c0_6 = arith.constant 0 : index
    %7 = vector.load %arg4[%c0_5, %c0_6] : memref<16x128xbf16, #tpu.memory_space<vmem>>, vector<16x128xbf16>
    tpu.vector_store %arg4[%c0_5, %c0_6], %6 {strides = array<i32>} : memref<16x128xbf16, #tpu.memory_space<vmem>>, vector<16x128xbf16>,
    return
  }
  func.func @transform_0(%arg0: i32) -> (i32, i32) {
    %c0_i32 = arith.constant 0 : i32
    %c0_i32_0 = arith.constant 0 : i32
    return %arg0, %c0_i32 : i32, i32
  }
  func.func @transform_1(%arg0: i32) -> (i32, i32) {
    %c0_i32 = arith.constant 0 : i32
    %c0_i32_0 = arith.constant 0 : i32
    %c0_i32_1 = arith.constant 0 : i32
    return %c0_i32, %c0_i32_0 : i32, i32
  }
  func.func @transform_2(%arg0: i32) -> (i32, i32) {
    %c0_i32 = arith.constant 0 : i32
    %c0_i32_0 = arith.constant 0 : i32
    %c0_i32_1 = arith.constant 0 : i32
    return %c0_i32, %c0_i32_0 : i32, i32
  }
  func.func @transform_3(%arg0: i32) -> (i32, i32) {
    %c0_i32 = arith.constant 0 : i32
    %c0_i32_0 = arith.constant 0 : i32
    return %arg0, %c0_i32 : i32, i32
  }
}

</mosaic_0001>

<llo_original>
// kernel: masked_embedder_forward.1
$region0: #{masked_embedder_forward.1}
  #allocation0 [shape = 'u32[]', space=smem, size = 0x4, offset = 0x4, fixed_abs, tag = 'smem constant byte address 0x4 - core index']
  #allocation1 [shape = 'u32[72,128]{1,0:T(1,128)}', space=vmem, size = 0x9000, scoped, tag = 'internal scratch']
  %s0 = inlined_call_operand.vmem [shape: bf16[32,128], index: 0, kind: input, shape index: {}]
  %s1 = inlined_call_operand.vmem [shape: bf16[128,128], index: 1, kind: input, shape index: {}]
  %s2 = inlined_call_operand.vmem [shape: f32[1,128], index: 2, kind: input, shape index: {}]
  %s3 = inlined_call_operand.vmem [shape: bf16[32,128], index: 3, kind: output, shape index: {}]
  %s4 = sld [smem:[#allocation0]]
  $region45: #{masked_embedder_forward.1} parent=0
    _
  %s6 = ssub.s32 1, %s4
  %s7 = scalar_select 0, %s6, %s4
  loop: start=0, step=1, limit=4
  $region2: #{masked_embedder_forward.1} parent=0 // loop_pre_header
    _
  $region3: #{masked_embedder_forward.1} parent=0 // loop_header
    %s9 = sphi 0, %s13
    %p10 = scmp.ge.s32.totalorder %s9, 4
    %s19 = sphi 0, %s21
    %s22 = sphi 0, %s19
    %s23 = sphi 0, %s22
    %s39 = sphi 0, %s23
    %s43 = sphi 0, %s43
    %s45 = sphi 0, %s43
    %s46 = sphi 0, %s45
    %s60 = sphi 0, %s46
    %s64 = sphi 0, %s64
    %s66 = sphi 0, %s64
    %s67 = sphi 0, %s66
    %s81 = sphi 0, %s67
    %s87 = sphi 0, %s89
    %s90 = sphi 0, %s87
    %s91 = sphi 0, %s90
    %s107 = sphi 0, %s91
  $region4: #{masked_embedder_forward.1} parent=0 // loop_header_branch
    %12 = sbr.rel (%p10) target = $region8
  $region5: #{masked_embedder_forward.1} parent=0 // loop_body
    %s14 = ssub.s32 %s9, 1
    %s15 = ssub.s32 %s9, 2
    %s16 = sadd.s32 %s9, 1
    %s17 = ssub.s32 %s9, %s16
    %p18 = scmp.eq.s32.totalorder %s17, 0
    %s20 = sadd.s32 %s19, 1
    %s21 = scalar_select %p18, %s19, %s20
    %p24 = pneg %p18
    %p25 = scmp.eq.s32.totalorder %s9, 1
    %p26 = por %p24, %p25
    %p27 = scmp.ne.s32.totalorder %s19, %s22
    %p28 = scmp.eq.s32.totalorder %s9, 0
    %p29 = por %p27, %p28
    %p30 = scmp.ne.s32.totalorder %s19, %s22
    %p31 = scmp.eq.s32.totalorder %s14, 1
    %p32 = por %p30, %p31
    %p33 = scmp.ne.s32.totalorder %s22, %s23
    %p34 = scmp.eq.s32.totalorder %s14, 0
    %p35 = por %p33, %p34
    %p36 = scmp.ne.s32.totalorder %s22, %s23
    %p37 = scmp.eq.s32.totalorder %s15, 1
    %p38 = por %p36, %p37
    %p40 = scmp.ne.s32.totalorder %s23, %s39
    %p41 = scmp.eq.s32.totalorder %s15, 0
    %p42 = por %p40, %p41
    %s44 = sadd.s32 %s43, 1
    %p47 = scmp.eq.s32.totalorder %s9, 1
    %p48 = scmp.ne.s32.totalorder %s43, %s45
    %p49 = scmp.eq.s32.totalorder %s9, 0
    %p50 = por %p48, %p49
    %p51 = scmp.ne.s32.totalorder %s43, %s45
    %p52 = scmp.eq.s32.totalorder %s14, 1
    %p53 = por %p51, %p52
    %p54 = scmp.ne.s32.totalorder %s45, %s46
    %p55 = scmp.eq.s32.totalorder %s14, 0
    %p56 = por %p54, %p55
    %p57 = scmp.ne.s32.totalorder %s45, %s46
    %p58 = scmp.eq.s32.totalorder %s15, 1
    %p59 = por %p57, %p58
    %p61 = scmp.ne.s32.totalorder %s46, %s60
    %p62 = scmp.eq.s32.totalorder %s15, 0
    %p63 = por %p61, %p62
    %s65 = sadd.s32 %s64, 1
    %p68 = scmp.eq.s32.totalorder %s9, 1
    %p69 = scmp.ne.s32.totalorder %s64, %s66
    %p70 = scmp.eq.s32.totalorder %s9, 0
    %p71 = por %p69, %p70
    %p72 = scmp.ne.s32.totalorder %s64, %s66
    %p73 = scmp.eq.s32.totalorder %s14, 1
    %p74 = por %p72, %p73
    %p75 = scmp.ne.s32.totalorder %s66, %s67
    %p76 = scmp.eq.s32.totalorder %s14, 0
    %p77 = por %p75, %p76
    %p78 = scmp.ne.s32.totalorder %s66, %s67
    %p79 = scmp.eq.s32.totalorder %s15, 1
    %p80 = por %p78, %p79
    %p82 = scmp.ne.s32.totalorder %s67, %s81
    %p83 = scmp.eq.s32.totalorder %s15, 0
    %p84 = por %p82, %p83
    %s85 = ssub.s32 %s9, %s16
    %p86 = scmp.eq.s32.totalorder %s85, 0
    %s88 = sadd.s32 %s87, 1
    %s89 = scalar_select %p86, %s87, %s88
    %p92 = pneg %p86
    %p93 = scmp.eq.s32.totalorder %s9, 1
    %p94 = por %p92, %p93
    %p95 = scmp.ne.s32.totalorder %s87, %s90
    %p96 = scmp.eq.s32.totalorder %s9, 0
    %p97 = por %p95, %p96
    %p98 = scmp.ne.s32.totalorder %s87, %s90
    %p99 = scmp.eq.s32.totalorder %s14, 1
    %p100 = por %p98, %p99
    %p101 = scmp.ne.s32.totalorder %s90, %s91
    %p102 = scmp.eq.s32.totalorder %s14, 0
    %p103 = por %p101, %p102
    %p104 = scmp.ne.s32.totalorder %s90, %s91
    %p105 = scmp.eq.s32.totalorder %s15, 1
    %p106 = por %p104, %p105
    %p108 = scmp.ne.s32.totalorder %s91, %s107
    %p109 = scmp.eq.s32.totalorder %s15, 0
    %p110 = por %p108, %p109
    %p111 = scmp.le.s32.totalorder 1, %s9
    %p112 = scmp.lt.s32.totalorder %s9, 3
    %p113 = pnand %p111, %p112
    %p114 = pneg %p113
    // Predicated region
    $region9: #{masked_embedder_forward.1} parent=5 // pred_check
      _
    $region10: #{masked_embedder_forward.1} parent=5 // pred_check_branch
      %116 = sbr.rel (%p113) target = $region12
    $region11: #{masked_embedder_forward.1} parent=5 // pred_region
      %s117 = ssub.s32 %s9, 1
      // Predicated region
      $region13: #{masked_embedder_forward.1} parent=11 // pred_check
        %p118 = pneg %p56
      $region14: #{masked_embedder_forward.1} parent=11 // pred_check_branch
        %120 = sbr.rel (%p118) target = $region16
      $region15: #{masked_embedder_forward.1} parent=11 // pred_region
        _
      $region16: #{masked_embedder_forward.1} parent=11 // pred_fallthru
        _
      // Predicated region
      $region17: #{masked_embedder_forward.1} parent=11 // pred_check
        %p121 = pneg %p77
      $region18: #{masked_embedder_forward.1} parent=11 // pred_check_branch
        %123 = sbr.rel (%p121) target = $region20
      $region19: #{masked_embedder_forward.1} parent=11 // pred_region
        _
      $region20: #{masked_embedder_forward.1} parent=11 // pred_fallthru
        _
    $region12: #{masked_embedder_forward.1} parent=5 // pred_fallthru
      _
    %p124 = scmp.lt.s32.totalorder %s9, 2
    // Predicated region
    $region21: #{masked_embedder_forward.1} parent=5 // pred_check
      %p125 = pneg %p124
    $region22: #{masked_embedder_forward.1} parent=5 // pred_check_branch
      %127 = sbr.rel (%p125) target = $region24
    $region23: #{masked_embedder_forward.1} parent=5 // pred_region
      // Predicated region
      $region25: #{masked_embedder_forward.1} parent=23 // pred_check
        %p128 = pneg %p29
      $region26: #{masked_embedder_forward.1} parent=23 // pred_check_branch
        %130 = sbr.rel (%p128) target = $region28
      $region27: #{masked_embedder_forward.1} parent=23 // pred_region
        %s131 = smul.u32 2, %s9
        %p132 = scmp.lt.s32.totalorder %s131, 3
        %s133 = scalar_select %p132, %s131, 3
        %s134 = smul.addr %s133, 4
        %s135 = scalar_lea.vmem %s0, %s134
        %s136 = smul.u32 2, %s9
      $region28: #{masked_embedder_forward.1} parent=23 // pred_fallthru
        _
    $region24: #{masked_embedder_forward.1} parent=5 // pred_fallthru
      _
    %p137 = scmp.le.s32.totalorder 1, %s9
    %p138 = scmp.lt.s32.totalorder %s9, 3
    %p139 = pnand %p137, %p138
    %p140 = pneg %p139
    // Predicated region
    $region29: #{masked_embedder_forward.1} parent=5 // pred_check
      _
    $region30: #{masked_embedder_forward.1} parent=5 // pred_check_branch
      %142 = sbr.rel (%p139) target = $region32
    $region31: #{masked_embedder_forward.1} parent=5 // pred_region
      %s143 = ssub.s32 %s9, 1
      %s144 = smul.u32 2, %s14
      %p145 = scmp.lt.s32.totalorder %s144, 3
      %s146 = scalar_select %p145, %s144, 3
      %s147 = smul.addr %s146, 4
      %s148 = scalar_lea.vmem %s0, %s147
      %p149 = pneg %p35
      %p150 = pneg %p32
      %p151 = pneg %p56
      %p152 = pneg %p53
      %p153 = pneg %p77
      %p154 = pneg %p74
      %p155 = pneg %p103
      %p156 = pneg %p100
      %s157 = smul.u32 2, %s14
      %p158 = scmp.lt.s32.totalorder %s157, 3
      %s159 = scalar_select %p158, %s157, 3
      %s160 = smul.addr %s159, 4
      %s161 = scalar_lea.vmem %s3, %s160
      %s162 = smul.u32 2, %s14
      %p163 = scmp.lt.s32.totalorder %s162, 3
      %s164 = scalar_select %p163, %s162, 3
      %s165 = smul.addr %s164, 4
      %s166 = scalar_lea.vmem %s0, %s165
      %s167 = smul.u32 2, %s14
      %s168 = smul.u32 2, %s14
      %p169 = scmp.lt.s32.totalorder %s168, 3
      %s170 = scalar_select %p169, %s168, 3
      %s171 = smul.addr %s170, 4
      %s172 = scalar_lea.vmem %s3, %s171
      %s173 = smul.u32 2, %s14
      %v174 = vld [vmem:[%s166] sm:$0xf]
      %v175 = vld [vmem:[%s166 + $0x4] sm:$0xf]
      %v176 = vld [vmem:[%s1] sm:$0xf]
      %v177 = vld [vmem:[%s1 + $0x4] sm:$0xf]
      %v178 = vld [vmem:[%s1 + $0x8] sm:$0xf]
      %v179 = vld [vmem:[%s1 + $0xc] sm:$0xf]
      %v180 = vld [vmem:[%s1 + $0x10] sm:$0xf]
      %v181 = vld [vmem:[%s1 + $0x14] sm:$0xf]
      %v182 = vld [vmem:[%s1 + $0x18] sm:$0xf]
      %v183 = vld [vmem:[%s1 + $0x1c] sm:$0xf]
      %v184 = vld [vmem:[%s1 + $0x20] sm:$0xf]
      %v185 = vld [vmem:[%s1 + $0x24] sm:$0xf]
      %v186 = vld [vmem:[%s1 + $0x28] sm:$0xf]
      %v187 = vld [vmem:[%s1 + $0x2c] sm:$0xf]
      %v188 = vld [vmem:[%s1 + $0x30] sm:$0xf]
      %v189 = vld [vmem:[%s1 + $0x34] sm:$0xf]
      %v190 = vld [vmem:[%s1 + $0x38] sm:$0xf]
      %v191 = vld [vmem:[%s1 + $0x3c] sm:$0xf]
      %v192 = vld [vmem:[%s2] sm:$0x1]
      %v194 = vperm.slane %v192, 0
      %v198 = vunpack.c.l.b16 %v174
      %v199 = vunpack.c.l.b16 %v175
      %v200 = vpack.c.b16 %v199, %v198
      %v218 = vunpack.c.l.b16 %v176
      %v219 = vunpack.c.l.b16 %v177
      %v220 = vunpack.c.l.b16 %v178
      %v221 = vunpack.c.l.b16 %v179
      %v222 = vunpack.c.l.b16 %v180
      %v223 = vunpack.c.l.b16 %v181
      %v224 = vunpack.c.l.b16 %v182
      %v225 = vunpack.c.l.b16 %v183
      %v226 = vunpack.c.l.b16 %v184
      %v227 = vunpack.c.l.b16 %v185
      %v228 = vunpack.c.l.b16 %v186
      %v229 = vunpack.c.l.b16 %v187
      %v230 = vunpack.c.l.b16 %v188
      %v231 = vunpack.c.l.b16 %v189
      %v232 = vunpack.c.l.b16 %v190
      %v233 = vunpack.c.l.b16 %v191
      %v234 = vpack.c.b16 %v219, %v218
      %v235 = vpack.c.b16 %v221, %v220
      %v236 = vpack.c.b16 %v223, %v222
      %v237 = vpack.c.b16 %v225, %v224
      %v238 = vpack.c.b16 %v227, %v226
      %v239 = vpack.c.b16 %v229, %v228
      %v240 = vpack.c.b16 %v231, %v230
      %v241 = vpack.c.b16 %v233, %v232
      %250 = vmatpush.bf16.msra.mxu0 %v241
      %251 = vmatpush.bf16.msra.mxu0 %v240
      %252 = vmatpush.bf16.msra.mxu0 %v239
      %253 = vmatpush.bf16.msra.mxu0 %v238
      %254 = vmatpush.bf16.msra.mxu0 %v237
      %255 = vmatpush.bf16.msra.mxu0 %v236
      %256 = vmatpush.bf16.msra.mxu0 %v235
      %257 = vmatpush.bf16.msra.mxu0 %v234
      %258 = vmatmul.bf16.gmra.mxu0 %v200
      %v259 = vpop.f32.mrf.mxu0
      %v260 = vadd.f32 %v194, %v259
      %v261 = vpop.f32.mrf.mxu0
      %v262 = vadd.f32 %v194, %v261
      %263 = vdwg.mxu0
      %v264 = vpack.c.bf16 %v260, %v260
      %v265 = vpack.c.bf16 %v262, %v262
      %266 = vst [vmem:[%s172] sm:$0xf] %v264
      %267 = vst [vmem:[%s172 + $0x4] sm:$0xf] %v265
      %s268 = smul.u32 2, %s14
      %p269 = scmp.lt.s32.totalorder %s268, 3
      %s270 = scalar_select %p269, %s268, 3
      %s271 = smul.addr %s270, 4
      %s272 = scalar_lea.vmem %s3, %s271
      // Predicated region
      $region33: #{masked_embedder_forward.1} parent=31 // pred_check
        %p273 = pneg %p100
      $region34: #{masked_embedder_forward.1} parent=31 // pred_check_branch
        %275 = sbr.rel (%p273) target = $region36
      $region35: #{masked_embedder_forward.1} parent=31 // pred_region
        %s276 = smul.u32 2, %s14
      $region36: #{masked_embedder_forward.1} parent=31 // pred_fallthru
        _
    $region32: #{masked_embedder_forward.1} parent=5 // pred_fallthru
      _
    %p277 = scmp.le.s32.totalorder 2, %s9
    // Predicated region
    $region37: #{masked_embedder_forward.1} parent=5 // pred_check
      %p278 = pneg %p277
    $region38: #{masked_embedder_forward.1} parent=5 // pred_check_branch
      %280 = sbr.rel (%p278) target = $region40
    $region39: #{masked_embedder_forward.1} parent=5 // pred_region
      %s281 = ssub.s32 %s9, 2
      // Predicated region
      $region41: #{masked_embedder_forward.1} parent=39 // pred_check
        %p282 = pneg %p106
      $region42: #{masked_embedder_forward.1} parent=39 // pred_check_branch
        %284 = sbr.rel (%p282) target = $region44
      $region43: #{masked_embedder_forward.1} parent=39 // pred_region
        %s285 = smul.u32 2, %s15
        %p286 = scmp.lt.s32.totalorder %s285, 3
        %s287 = scalar_select %p286, %s285, 3
        %s288 = smul.addr %s287, 4
        %s289 = scalar_lea.vmem %s3, %s288
      $region44: #{masked_embedder_forward.1} parent=39 // pred_fallthru
        _
    $region40: #{masked_embedder_forward.1} parent=5 // pred_fallthru
      _
  $region6: #{masked_embedder_forward.1} parent=0 // loop_footer
    %s13 = sadd.s32 1, %s9
  $region7: #{masked_embedder_forward.1} parent=0 // loop_footer_branch
    %8 = sbr.rel target = $region3
  $region8: #{masked_embedder_forward.1} parent=0 // loop_exit
    _

</llo_original>
